<compile_context>
chip_gen: v7x
topology: tpu7x:2x2x1
jax: 0.10.0
libtpu: 0.0.40
codegen_flags: <defaults>
</compile_context>

<pallas_src>
import jax
import jax.numpy as jnp
from jax.experimental import pallas as pl
from jax.experimental.pallas import tpu as pltpu

LANES = 128


def baseline_kernel(obs_ref, tsn_ref, mask_ref, w_ref, out_ref):
    # obs_ref : (D, R, 128) f32 VMEM  -- observations, feature axis leading
    # tsn_ref : (R, 128)    f32 VMEM  -- t * (1/T), replicated over batch
    # mask_ref: (R, 128)    f32 VMEM
    # w_ref   : (F,)        f32 SMEM  -- F = 2*D + 4
    # out_ref : (R, 128)    f32 VMEM
    D = obs_ref.shape[0]

    mask = mask_ref[...]                       # (R, 128)
    ts = tsn_ref[...] * mask                   # time_step = (t / T) * mask
    ts2 = ts * ts
    ts3 = ts2 * ts

    acc = (ts * w_ref[2 * D]
           + ts2 * w_ref[2 * D + 1]
           + ts3 * w_ref[2 * D + 2]
           + mask * w_ref[2 * D + 3])          # (R, 128)

    for d in range(D):                         # D tiny & static -> unrolled FMAs
        row = obs_ref[d]                       # (R, 128) contiguous VMEM load
        acc = acc + row * w_ref[d] + (row * row) * w_ref[D + d]

    out_ref[...] = acc


def _pick_block_rows(R, *, max_rows=512, min_rows=64, target_steps=8):
    # ~64K f32 elements per block (512 x 128) amortizes the ~0.35us per-step
    # cost; keep >= ~target_steps grid steps (megacore / pipelining) when the
    # array is large enough, and keep the block a multiple of 8 sublanes.
    if R <= min_rows:
        return R                               # single full-dim block
    rows = min(max_rows, R, max(min_rows, pl.cdiv(R, target_steps)))
    return max(8, (rows // 8) * 8)


def linear_feature_baseline_forward(observations, mask, weight, *, block_rows=None):
    """observations: (T, B, D), mask: (T, B), weight: (2*D+4,) -> values (T, B)."""
    T, B, D = observations.shape
    F = 2 * D + 4
    assert weight.shape == (F,)
    N = T * B
    R = pl.cdiv(N, LANES)
    N_pad = R * LANES

    # Lane-dense operands: big (T*B) axis packed into (rows, 128) tiles.
    obs2d = jnp.transpose(observations.astype(jnp.float32), (2, 0, 1)).reshape(D, N)
    mask1d = mask.astype(jnp.float32).reshape(N)
    tsn1d = jnp.broadcast_to(
        (jnp.arange(T, dtype=jnp.float32) * (1.0 / T))[:, None], (T, B)).reshape(N)

    if N_pad != N:
        pad = N_pad - N
        obs2d = jnp.pad(obs2d, ((0, 0), (0, pad)))
        mask1d = jnp.pad(mask1d, (0, pad))     # mask = 0 on padding
        tsn1d = jnp.pad(tsn1d, (0, pad))

    obs3d = obs2d.reshape(D, R, LANES)
    mask2d = mask1d.reshape(R, LANES)
    tsn2d = tsn1d.reshape(R, LANES)
    w = weight.astype(jnp.float32).reshape(F)

    if block_rows is None:
        block_rows = _pick_block_rows(R)
    br = min(block_rows, R)
    if br < R:
        br = max(8, (br // 8) * 8)             # (8,128) rule unless full dim
    grid = (pl.cdiv(R, br),)                   # partial trailing block handled by Pallas

    out = pl.pallas_call(
        baseline_kernel,
        out_shape=jax.ShapeDtypeStruct((R, LANES), jnp.float32),
        grid=grid,
        in_specs=[
            pl.BlockSpec((D, br, LANES), lambda i: (0, i, 0)),
            pl.BlockSpec((br, LANES), lambda i: (i, 0)),
            pl.BlockSpec((br, LANES), lambda i: (i, 0)),
            pl.BlockSpec(memory_space=pltpu.MemorySpace.SMEM),
        ],
        out_specs=pl.BlockSpec((br, LANES), lambda i: (i, 0)),
        compiler_params=pltpu.CompilerParams(
            dimension_semantics=("parallel",)),
    )(obs3d, tsn2d, mask2d, w)

    return out.reshape(N_pad)[:N].reshape(T, B)


def _reference_forward(observations, mask, weight):
    """Pure-JAX reference mirroring the PyTorch forward."""
    T, B, D = observations.shape
    ones = mask[..., None]
    ts = (jnp.arange(T, dtype=jnp.float32).reshape(T, 1, 1) * ones) / T
    feats = jnp.concatenate(
        [observations, observations ** 2, ts, ts ** 2, ts ** 3, ones], axis=2)
    return (feats.reshape(-1, 2 * D + 4) @ weight).reshape(T, B)


if __name__ == "__main__":
    key = jax.random.PRNGKey(0)

    # Case 1: small shapes consistent with the module (seq T=8, batch B=2, D=6).
    T, B, D = 8, 2, 6
    F = 2 * D + 4
    k_obs, k_w = jax.random.split(key)
    observations = jax.random.normal(k_obs, (T, B, D), dtype=jnp.float32)
    mask = jnp.ones((T, B), dtype=jnp.float32)
    mask = mask.at[6:, 1].set(0.0)            # padded tail of second episode
    weight = 0.1 * jax.random.normal(k_w, (F,), dtype=jnp.float32)

    out = linear_feature_baseline_forward(observations, mask, weight)
    out = jax.block_until_ready(out)
    ref = _reference_forward(observations, mask, weight)
    assert out.shape == (T, B)
    assert jnp.allclose(out, ref, atol=1e-5, rtol=1e-5), (out, ref)

    # Case 2: N not a multiple of 128 (lane padding) + forced multi-block grid
    # with a partial trailing block (block_rows=8), plus the default block path.
    T2, B2, D2 = 257, 9, 6
    F2 = 2 * D2 + 4
    k_obs2, k_w2, k_m2 = jax.random.split(jax.random.PRNGKey(0), 3)
    observations2 = jax.random.normal(k_obs2, (T2, B2, D2), dtype=jnp.float32)
    mask2 = (jax.random.uniform(k_m2, (T2, B2)) > 0.25).astype(jnp.float32)
    weight2 = 0.1 * jax.random.normal(k_w2, (F2,), dtype=jnp.float32)
    ref2 = _reference_forward(observations2, mask2, weight2)

    out2a = jax.block_until_ready(
        linear_feature_baseline_forward(observations2, mask2, weight2, block_rows=8))
    assert out2a.shape == (T2, B2)
    assert jnp.allclose(out2a, ref2, atol=1e-4, rtol=1e-5)

    out2b = jax.block_until_ready(
        linear_feature_baseline_forward(observations2, mask2, weight2))
    assert jnp.allclose(out2b, ref2, atol=1e-4, rtol=1e-5)

    # Case 3: large enough for the default multi-block path (R=80 rows -> grid 2).
    T3, B3, D3 = 160, 64, 6
    F3 = 2 * D3 + 4
    k_obs3, k_w3 = jax.random.split(jax.random.PRNGKey(3))
    observations3 = jax.random.normal(k_obs3, (T3, B3, D3), dtype=jnp.float32)
    mask3 = jnp.ones((T3, B3), dtype=jnp.float32)
    weight3 = 0.1 * jax.random.normal(k_w3, (F3,), dtype=jnp.float32)
    out3 = jax.block_until_ready(
        linear_feature_baseline_forward(observations3, mask3, weight3))
    ref3 = _reference_forward(observations3, mask3, weight3)
    assert jnp.allclose(out3, ref3, atol=1e-4, rtol=1e-5)

    print("KERNEL_OK")
</pallas_src>

<mosaic_0001>
module attributes {stable_mosaic.version = 11 : i64} {
  func.func @baseline_kernel(%arg0: i32, %arg1: memref<6x1x128xf32, #tpu.memory_space<vmem>>, %arg2: memref<1x128xf32, #tpu.memory_space<vmem>>, %arg3: memref<1x128xf32, #tpu.memory_space<vmem>>, %arg4: memref<16xf32, #tpu.memory_space<smem>>, %arg5: memref<1x128xf32, #tpu.memory_space<vmem>>) attributes {dimension_semantics = [#tpu.dimension_semantics<parallel>], iteration_bounds = array<i64: 1>, scalar_prefetch = 0 : i64, scratch_operands = 0 : i64, tpu.core_type = #tpu.core_type<tc>, window_params = [{transform_indices = @transform_0, window_bounds = array<i64: 6, 1, 128>}, {transform_indices = @transform_1, window_bounds = array<i64: 1, 128>}, {transform_indices = @transform_2, window_bounds = array<i64: 1, 128>}, {transform_indices = @transform_3, window_bounds = array<i64: 16>}, {transform_indices = @transform_4, window_bounds = array<i64: 1, 128>}]} {
    %c0 = arith.constant 0 : index
    %c0_0 = arith.constant 0 : index
    %0 = vector.load %arg3[%c0, %c0_0] : memref<1x128xf32, #tpu.memory_space<vmem>>, vector<1x128xf32>
    %c0_1 = arith.constant 0 : index
    %c0_2 = arith.constant 0 : index
    %1 = vector.load %arg2[%c0_1, %c0_2] : memref<1x128xf32, #tpu.memory_space<vmem>>, vector<1x128xf32>
    %2 = arith.mulf %1, %0 : vector<1x128xf32>
    %3 = arith.mulf %2, %2 : vector<1x128xf32>
    %4 = arith.mulf %3, %2 : vector<1x128xf32>
    %c12 = arith.constant 12 : index
    %5 = memref.load %arg4[%c12] : memref<16xf32, #tpu.memory_space<smem>>
    %6 = vector.broadcast %5 : f32 to vector<1x128xf32>
    %7 = arith.mulf %2, %6 : vector<1x128xf32>
    %c13 = arith.constant 13 : index
    %8 = memref.load %arg4[%c13] : memref<16xf32, #tpu.memory_space<smem>>
    %9 = vector.broadcast %8 : f32 to vector<1x128xf32>
    %10 = arith.mulf %3, %9 : vector<1x128xf32>
    %11 = arith.addf %7, %10 : vector<1x128xf32>
    %c14 = arith.constant 14 : index
    %12 = memref.load %arg4[%c14] : memref<16xf32, #tpu.memory_space<smem>>
    %13 = vector.broadcast %12 : f32 to vector<1x128xf32>
    %14 = arith.mulf %4, %13 : vector<1x128xf32>
    %15 = arith.addf %11, %14 : vector<1x128xf32>
    %c15 = arith.constant 15 : index
    %16 = memref.load %arg4[%c15] : memref<16xf32, #tpu.memory_space<smem>>
    %17 = vector.broadcast %16 : f32 to vector<1x128xf32>
    %18 = arith.mulf %0, %17 : vector<1x128xf32>
    %19 = arith.addf %15, %18 : vector<1x128xf32>
    %c0_3 = arith.constant 0 : index
    %c0_4 = arith.constant 0 : index
    %c0_5 = arith.constant 0 : index
    %20 = vector.load %arg1[%c0_3, %c0_4, %c0_5] : memref<6x1x128xf32, #tpu.memory_space<vmem>>, vector<1x1x128xf32>
    %21 = vector.shape_cast %20 : vector<1x1x128xf32> to vector<1x128xf32>
    %c0_6 = arith.constant 0 : index
    %22 = memref.load %arg4[%c0_6] : memref<16xf32, #tpu.memory_space<smem>>
    %23 = vector.broadcast %22 : f32 to vector<1x128xf32>
    %24 = arith.mulf %21, %23 : vector<1x128xf32>
    %25 = arith.addf %19, %24 : vector<1x128xf32>
    %26 = arith.mulf %21, %21 : vector<1x128xf32>
    %c6 = arith.constant 6 : index
    %27 = memref.load %arg4[%c6] : memref<16xf32, #tpu.memory_space<smem>>
    %28 = vector.broadcast %27 : f32 to vector<1x128xf32>
    %29 = arith.mulf %26, %28 : vector<1x128xf32>
    %30 = arith.addf %25, %29 : vector<1x128xf32>
    %c1 = arith.constant 1 : index
    %c0_7 = arith.constant 0 : index
    %c0_8 = arith.constant 0 : index
    %31 = vector.load %arg1[%c1, %c0_7, %c0_8] : memref<6x1x128xf32, #tpu.memory_space<vmem>>, vector<1x1x128xf32>
    %32 = vector.shape_cast %31 : vector<1x1x128xf32> to vector<1x128xf32>
    %c1_9 = arith.constant 1 : index
    %33 = memref.load %arg4[%c1_9] : memref<16xf32, #tpu.memory_space<smem>>
    %34 = vector.broadcast %33 : f32 to vector<1x128xf32>
    %35 = arith.mulf %32, %34 : vector<1x128xf32>
    %36 = arith.addf %30, %35 : vector<1x128xf32>
    %37 = arith.mulf %32, %32 : vector<1x128xf32>
    %c7 = arith.constant 7 : index
    %38 = memref.load %arg4[%c7] : memref<16xf32, #tpu.memory_space<smem>>
    %39 = vector.broadcast %38 : f32 to vector<1x128xf32>
    %40 = arith.mulf %37, %39 : vector<1x128xf32>
    %41 = arith.addf %36, %40 : vector<1x128xf32>
    %c2 = arith.constant 2 : index
    %c0_10 = arith.constant 0 : index
    %c0_11 = arith.constant 0 : index
    %42 = vector.load %arg1[%c2, %c0_10, %c0_11] : memref<6x1x128xf32, #tpu.memory_space<vmem>>, vector<1x1x128xf32>
    %43 = vector.shape_cast %42 : vector<1x1x128xf32> to vector<1x128xf32>
    %c2_12 = arith.constant 2 : index
    %44 = memref.load %arg4[%c2_12] : memref<16xf32, #tpu.memory_space<smem>>
    %45 = vector.broadcast %44 : f32 to vector<1x128xf32>
    %46 = arith.mulf %43, %45 : vector<1x128xf32>
    %47 = arith.addf %41, %46 : vector<1x128xf32>
    %48 = arith.mulf %43, %43 : vector<1x128xf32>
    %c8 = arith.constant 8 : index
    %49 = memref.load %arg4[%c8] : memref<16xf32, #tpu.memory_space<smem>>
    %50 = vector.broadcast %49 : f32 to vector<1x128xf32>
    %51 = arith.mulf %48, %50 : vector<1x128xf32>
    %52 = arith.addf %47, %51 : vector<1x128xf32>
    %c3 = arith.constant 3 : index
    %c0_13 = arith.constant 0 : index
    %c0_14 = arith.constant 0 : index
    %53 = vector.load %arg1[%c3, %c0_13, %c0_14] : memref<6x1x128xf32, #tpu.memory_space<vmem>>, vector<1x1x128xf32>
    %54 = vector.shape_cast %53 : vector<1x1x128xf32> to vector<1x128xf32>
    %c3_15 = arith.constant 3 : index
    %55 = memref.load %arg4[%c3_15] : memref<16xf32, #tpu.memory_space<smem>>
    %56 = vector.broadcast %55 : f32 to vector<1x128xf32>
    %57 = arith.mulf %54, %56 : vector<1x128xf32>
    %58 = arith.addf %52, %57 : vector<1x128xf32>
    %59 = arith.mulf %54, %54 : vector<1x128xf32>
    %c9 = arith.constant 9 : index
    %60 = memref.load %arg4[%c9] : memref<16xf32, #tpu.memory_space<smem>>
    %61 = vector.broadcast %60 : f32 to vector<1x128xf32>
    %62 = arith.mulf %59, %61 : vector<1x128xf32>
    %63 = arith.addf %58, %62 : vector<1x128xf32>
    %c4 = arith.constant 4 : index
    %c0_16 = arith.constant 0 : index
    %c0_17 = arith.constant 0 : index
    %64 = vector.load %arg1[%c4, %c0_16, %c0_17] : memref<6x1x128xf32, #tpu.memory_space<vmem>>, vector<1x1x128xf32>
    %65 = vector.shape_cast %64 : vector<1x1x128xf32> to vector<1x128xf32>
    %c4_18 = arith.constant 4 : index
    %66 = memref.load %arg4[%c4_18] : memref<16xf32, #tpu.memory_space<smem>>
    %67 = vector.broadcast %66 : f32 to vector<1x128xf32>
    %68 = arith.mulf %65, %67 : vector<1x128xf32>
    %69 = arith.addf %63, %68 : vector<1x128xf32>
    %70 = arith.mulf %65, %65 : vector<1x128xf32>
    %c10 = arith.constant 10 : index
    %71 = memref.load %arg4[%c10] : memref<16xf32, #tpu.memory_space<smem>>
    %72 = vector.broadcast %71 : f32 to vector<1x128xf32>
    %73 = arith.mulf %70, %72 : vector<1x128xf32>
    %74 = arith.addf %69, %73 : vector<1x128xf32>
    %c5 = arith.constant 5 : index
    %c0_19 = arith.constant 0 : index
    %c0_20 = arith.constant 0 : index
    %75 = vector.load %arg1[%c5, %c0_19, %c0_20] : memref<6x1x128xf32, #tpu.memory_space<vmem>>, vector<1x1x128xf32>
    %76 = vector.shape_cast %75 : vector<1x1x128xf32> to vector<1x128xf32>
    %c5_21 = arith.constant 5 : index
    %77 = memref.load %arg4[%c5_21] : memref<16xf32, #tpu.memory_space<smem>>
    %78 = vector.broadcast %77 : f32 to vector<1x128xf32>
    %79 = arith.mulf %76, %78 : vector<1x128xf32>
    %80 = arith.addf %74, %79 : vector<1x128xf32>
    %81 = arith.mulf %76, %76 : vector<1x128xf32>
    %c11 = arith.constant 11 : index
    %82 = memref.load %arg4[%c11] : memref<16xf32, #tpu.memory_space<smem>>
    %83 = vector.broadcast %82 : f32 to vector<1x128xf32>
    %84 = arith.mulf %81, %83 : vector<1x128xf32>
    %85 = arith.addf %80, %84 : vector<1x128xf32>
    %c0_22 = arith.constant 0 : index
    %c0_23 = arith.constant 0 : index
    %86 = vector.load %arg5[%c0_22, %c0_23] : memref<1x128xf32, #tpu.memory_space<vmem>>, vector<1x128xf32>
    tpu.vector_store %arg5[%c0_22, %c0_23], %85 {strides = array<i32>} : memref<1x128xf32, #tpu.memory_space<vmem>>, vector<1x128xf32>,
    return
  }
  func.func @transform_0(%arg0: i32) -> (i32, i32, i32) {
    %c0_i32 = arith.constant 0 : i32
    %c0_i32_0 = arith.constant 0 : i32
    %c0_i32_1 = arith.constant 0 : i32
    return %c0_i32, %arg0, %c0_i32_0 : i32, i32, i32
  }
  func.func @transform_1(%arg0: i32) -> (i32, i32) {
    %c0_i32 = arith.constant 0 : i32
    %c0_i32_0 = arith.constant 0 : i32
    return %arg0, %c0_i32 : i32, i32
  }
  func.func @transform_2(%arg0: i32) -> (i32, i32) {
    %c0_i32 = arith.constant 0 : i32
    %c0_i32_0 = arith.constant 0 : i32
    return %arg0, %c0_i32 : i32, i32
  }
  func.func @transform_3(%arg0: i32) -> i32 {
    %c0_i32 = arith.constant 0 : i32
    %c0_i32_0 = arith.constant 0 : i32
    return %c0_i32 : i32
  }
  func.func @transform_4(%arg0: i32) -> (i32, i32) {
    %c0_i32 = arith.constant 0 : i32
    %c0_i32_0 = arith.constant 0 : i32
    return %arg0, %c0_i32 : i32, i32
  }
}

</mosaic_0001>

<llo_original>
// kernel: tpu_custom_call.1
$region0: #{tpu_custom_call.1}
  #allocation0 [shape = 'u32[]', space=smem, size = 0x4, offset = 0x4, fixed_abs, tag = 'smem constant byte address 0x4 - core index']
  #allocation1 [shape = 'u32[144,128]{1,0:T(1,128)}', space=vmem, size = 0x12000, scoped, tag = 'internal scratch']
  %s0 = inlined_call_operand.hbm [shape: f32[6,1,128], index: 0, kind: input, shape index: {}]
  %s1 = inlined_call_operand.vmem [shape: f32[1,128], index: 1, kind: input, shape index: {}]
  %s2 = inlined_call_operand.vmem [shape: f32[1,128], index: 2, kind: input, shape index: {}]
  %s3 = inlined_call_operand.vmem [shape: f32[16], index: 3, kind: input, shape index: {}]
  %s4 = inlined_call_operand.hbm [shape: f32[1,128], index: 4, kind: output, shape index: {}]
  %s5 = sld [smem:[#allocation0]]
  $region34: #{tpu_custom_call.1} parent=0
    _
  %s7 = ssub.s32 1, %s5
  %s8 = scalar_select 0, %s7, %s5
  $region1: #{tpu_custom_call.1} parent=0
    #allocation2 [shape = 'u8[3072]{0}', space=vmem, size = 0xc00, scoped, tag = 'input window, operand 0, single buffered']
    #allocation3 [shape = 's32[1]{0}', space=sflag, size = 0x4, scoped, tag = 'scoped memory for tpu_custom_call.1']
    #allocation4 [shape = 's32[1]{0}', space=sflag, size = 0x4, scoped, tag = 'scoped memory for tpu_custom_call.1']
    #allocation5 [shape = 's32[1]{0}', space=sflag, size = 0x4, scoped, tag = 'scoped memory for tpu_custom_call.1']
    #allocation6 [shape = 'u8[512]{0}', space=smem, size = 0x200, scoped, tag = 'input window, operand 3, single buffered']
    #allocation7 [shape = 'u8[512]{0}', space=vmem, size = 0x400, scoped, tag = 'output window, operand 0, single buffered']
    %9 = vsyncpa [#allocation3], 0
    %10 = vsyncpa [#allocation5], 0
    %11 = vsyncpa [#allocation4], 0
    // Predicated region
    $region2: #{tpu_custom_call.1} parent=1 // pred_check
      _
    $region3: #{tpu_custom_call.1} parent=1 // pred_check_branch
      %13 = sbr.rel (0) target = $region5
    $region4: #{tpu_custom_call.1} parent=1 // pred_region
      %s15 = ssub.s32 96, 96
      %16 = vsyncadd [#allocation3], %s15
      %s17 = sshll.u32 [#allocation2], 4
      %s18 = int_to_ptr.vmem [resolvable:$true] %s17
      %23 = dma.hbm_to_vmem [thread:$0]  %s0, 96, %s18, [#allocation3], 16, 16, 1
    $region5: #{tpu_custom_call.1} parent=1 // pred_fallthru
      _
    // Predicated region
    $region6: #{tpu_custom_call.1} parent=1 // pred_check
      _
    $region7: #{tpu_custom_call.1} parent=1 // pred_check_branch
      %25 = sbr.rel (0) target = $region9
    $region8: #{tpu_custom_call.1} parent=1 // pred_region
      _
    $region9: #{tpu_custom_call.1} parent=1 // pred_fallthru
      _
    // Predicated region
    $region10: #{tpu_custom_call.1} parent=1 // pred_check
      _
    $region11: #{tpu_custom_call.1} parent=1 // pred_check_branch
      %27 = sbr.rel (0) target = $region13
    $region12: #{tpu_custom_call.1} parent=1 // pred_region
      _
    $region13: #{tpu_custom_call.1} parent=1 // pred_fallthru
      _
    // Predicated region
    $region14: #{tpu_custom_call.1} parent=1 // pred_check
      _
    $region15: #{tpu_custom_call.1} parent=1 // pred_check_branch
      %29 = sbr.rel (0) target = $region17
    $region16: #{tpu_custom_call.1} parent=1 // pred_region
      %s31 = ssub.s32 16, 16
      %32 = vsyncadd [#allocation5], %s31
      %s34 = sshll.u32 %s3, 4
      %s35 = int_to_ptr.vmem [resolvable:$true] %s34
      %37 = dma.vmem_to_smem %s35, 16, [#allocation6], [#allocation5]
    $region17: #{tpu_custom_call.1} parent=1 // pred_fallthru
      _
    // Predicated region
    $region18: #{tpu_custom_call.1} parent=1 // pred_check
      _
    $region19: #{tpu_custom_call.1} parent=1 // pred_check_branch
      %39 = sbr.rel (0) target = $region21
    $region20: #{tpu_custom_call.1} parent=1 // pred_region
      %40 = dma.done [#allocation3], 96
    $region21: #{tpu_custom_call.1} parent=1 // pred_fallthru
      _
    // Predicated region
    $region22: #{tpu_custom_call.1} parent=1 // pred_check
      _
    $region23: #{tpu_custom_call.1} parent=1 // pred_check_branch
      %42 = sbr.rel (0) target = $region25
    $region24: #{tpu_custom_call.1} parent=1 // pred_region
      %43 = dma.done [#allocation5], 16
    $region25: #{tpu_custom_call.1} parent=1 // pred_fallthru
      _
    %44 = sfence
    %v45 = vld [vmem:[%s2] sm:$0x1]
    %v46 = vld [vmem:[%s1] sm:$0x1]
    %v47 = vmul.f32 %v46, %v45
    %v48 = vmul.f32 %v47, %v47
    %v49 = vmul.f32 %v48, %v47
    %s50 = sld [smem:[#allocation6 + $0xc]]
    %v51 = vstv %s50
    %v52 = vmul.f32 %v47, %v51
    %s53 = sld [smem:[#allocation6 + $0xd]]
    %v54 = vstv %s53
    %v55 = vmul.f32 %v48, %v54
    %v56 = vadd.f32 %v52, %v55
    %s57 = sld [smem:[#allocation6 + $0xe]]
    %v58 = vstv %s57
    %v59 = vmul.f32 %v49, %v58
    %v60 = vadd.f32 %v56, %v59
    %s61 = sld [smem:[#allocation6 + $0xf]]
    %v62 = vstv %s61
    %v63 = vmul.f32 %v45, %v62
    %v64 = vadd.f32 %v60, %v63
    %v65 = vld [vmem:[#allocation2] sm:$0x1]
    %s66 = sld [smem:[#allocation6]]
    %v67 = vstv %s66
    %v68 = vmul.f32 %v65, %v67
    %v69 = vadd.f32 %v64, %v68
    %v70 = vmul.f32 %v65, %v65
    %s71 = sld [smem:[#allocation6 + $0x6]]
    %v72 = vstv %s71
    %v73 = vmul.f32 %v70, %v72
    %v74 = vadd.f32 %v69, %v73
    %s75 = scalar_lea.vmem [#allocation2], 1
    %v76 = vld [vmem:[%s75] sm:$0x1]
    %s77 = sld [smem:[#allocation6 + $0x1]]
    %v78 = vstv %s77
    %v79 = vmul.f32 %v76, %v78
    %v80 = vadd.f32 %v74, %v79
    %v81 = vmul.f32 %v76, %v76
    %s82 = sld [smem:[#allocation6 + $0x7]]
    %v83 = vstv %s82
    %v84 = vmul.f32 %v81, %v83
    %v85 = vadd.f32 %v80, %v84
    %s86 = scalar_lea.vmem [#allocation2], 2
    %v87 = vld [vmem:[%s86] sm:$0x1]
    %s88 = sld [smem:[#allocation6 + $0x2]]
    %v89 = vstv %s88
    %v90 = vmul.f32 %v87, %v89
    %v91 = vadd.f32 %v85, %v90
    %v92 = vmul.f32 %v87, %v87
    %s93 = sld [smem:[#allocation6 + $0x8]]
    %v94 = vstv %s93
    %v95 = vmul.f32 %v92, %v94
    %v96 = vadd.f32 %v91, %v95
    %s97 = scalar_lea.vmem [#allocation2], 3
    %v98 = vld [vmem:[%s97] sm:$0x1]
    %s99 = sld [smem:[#allocation6 + $0x3]]
    %v100 = vstv %s99
    %v101 = vmul.f32 %v98, %v100
    %v102 = vadd.f32 %v96, %v101
    %v103 = vmul.f32 %v98, %v98
    %s104 = sld [smem:[#allocation6 + $0x9]]
    %v105 = vstv %s104
    %v106 = vmul.f32 %v103, %v105
    %v107 = vadd.f32 %v102, %v106
    %s108 = scalar_lea.vmem [#allocation2], 4
    %v109 = vld [vmem:[%s108] sm:$0x1]
    %s110 = sld [smem:[#allocation6 + $0x4]]
    %v111 = vstv %s110
    %v112 = vmul.f32 %v109, %v111
    %v113 = vadd.f32 %v107, %v112
    %v114 = vmul.f32 %v109, %v109
    %s115 = sld [smem:[#allocation6 + $0xa]]
    %v116 = vstv %s115
    %v117 = vmul.f32 %v114, %v116
    %v118 = vadd.f32 %v113, %v117
    %s119 = scalar_lea.vmem [#allocation2], 5
    %v120 = vld [vmem:[%s119] sm:$0x1]
    %s121 = sld [smem:[#allocation6 + $0x5]]
    %v122 = vstv %s121
    %v123 = vmul.f32 %v120, %v122
    %v124 = vadd.f32 %v118, %v123
    %v125 = vmul.f32 %v120, %v120
    %s126 = sld [smem:[#allocation6 + $0xb]]
    %v127 = vstv %s126
    %v128 = vmul.f32 %v125, %v127
    %v129 = vadd.f32 %v124, %v128
    %130 = vst [vmem:[#allocation7] sm:$0x1] %v129
    // Predicated region
    $region26: #{tpu_custom_call.1} parent=1 // pred_check
      _
    $region27: #{tpu_custom_call.1} parent=1 // pred_check_branch
      %132 = sbr.rel (0) target = $region29
    $region28: #{tpu_custom_call.1} parent=1 // pred_region
      %s134 = ssub.s32 16, 16
      %135 = vsyncadd [#allocation4], %s134
      %s137 = sshll.u32 [#allocation7], 4
      %s138 = int_to_ptr.vmem [resolvable:$true] %s137
      %140 = dma.vmem_to_hbm [thread:$0]  %s138, 16, %s4, [#allocation4]
    $region29: #{tpu_custom_call.1} parent=1 // pred_fallthru
      _
    // Predicated region
    $region30: #{tpu_custom_call.1} parent=1 // pred_check
      _
    $region31: #{tpu_custom_call.1} parent=1 // pred_check_branch
      %142 = sbr.rel (0) target = $region33
    $region32: #{tpu_custom_call.1} parent=1 // pred_region
      %143 = dma.done [#allocation4], 16
    $region33: #{tpu_custom_call.1} parent=1 // pred_fallthru
      _
    %144 = vsyncpa [#allocation3], 1
    %145 = vsyncpa [#allocation4], 1
    %146 = vsyncpa [#allocation5], 1

</llo_original>
